<compile_context>
chip_gen: v5e
topology: v5e:2x2
jax: 0.10.0
libtpu: 0.0.40
codegen_flags: <defaults>
</compile_context>

<pallas_src>
import functools

import jax
import jax.numpy as jnp
from jax.experimental import pallas as pl
from jax.experimental.pallas import tpu as pltpu


_LANE = 128
_SUBLANE = 8
_MIN_SPLIT_BYTES = 256 * 1024          # lowered bar for splitting into >=2 tiles


def _round_up(x, m):
    return (x + m - 1) // m * m


def _min_row_tile(dtype):
    """Sublane packing granularity: f32 -> 8, bf16 -> 16, int8/fp8 -> 32."""
    itemsize = jnp.dtype(dtype).itemsize
    return max(_SUBLANE, 32 // max(itemsize, 1))


@functools.lru_cache(maxsize=None)
def _hw_config():
    """(vmem_limit_bytes, target_block_elems, max_single_pass_elems)."""
    try:
        vmem_phys = int(pltpu.get_tpu_info().vmem_capacity_bytes)
    except Exception:
        vmem_phys = 64 * 1024 * 1024            # conservative (v7x-like) default
    vmem_phys = max(vmem_phys, 32 * 1024 * 1024)
    # ~75% of physical: 96 MiB on v5e/v6e (128 MiB), 48 MiB on v7x (64 MiB).
    vmem_limit = min((vmem_phys * 3) // 4, 100 * 1024 * 1024)
    # Per-buffer target ~= limit/12 bytes: in+out double-buffered (4x) plus f32
    # intermediates still leave headroom.  -> 2M elems (8 MiB) on v5e/v6e,
    # 1M elems (4 MiB) on v7x.
    target_block_elems = max(512 * 1024, vmem_limit // 48)
    # Largest (min_rows, hw) slab still routed to the 2x-traffic single-pass
    # path: 3M elems (12 MiB f32) on v5e/v6e, 1.5M (6 MiB) on v7x.
    max_single_pass_elems = vmem_limit // 32
    return vmem_limit, target_block_elems, max_single_pass_elems


# --------------------------------------------------------------------------
# Single-pass kernel: whole (rows_tile, H*W) slab resident in VMEM.
# Exact two-sweep variance (matches torch.std(unbiased=False)); extra sweep is
# over VMEM-resident data only, the kernel stays HBM-bound.
# --------------------------------------------------------------------------
def _instance_norm_kernel(x_ref, o_ref, *, epsilon, hw):
    x = x_ref[...].astype(jnp.float32)                     # (rt, hw)
    inv_hw = 1.0 / hw
    mean = jnp.sum(x, axis=-1, keepdims=True) * inv_hw
    xc = x - mean
    var = jnp.sum(xc * xc, axis=-1, keepdims=True) * inv_hw
    inv_std = 1.0 / (jnp.sqrt(var) + epsilon)              # tiny (rt,1) divide
    o_ref[...] = (xc * inv_std).astype(o_ref.dtype)


def _pick_rows_tile(rows, hw, min_rt, target_elems, itemsize):
    if rows <= min_rt:
        return rows                                        # full dim (exempt)
    rt = max(min_rt, (target_elems // max(hw, 1)) // min_rt * min_rt)
    if rt >= rows:
        rt = rows
        # Prefer >=2 tiles (both v7x TCs busy + DMA/compute overlap) when each
        # tile still carries a reasonably sized DMA.
        half = _round_up(-(-rows // 2), min_rt)
        if half < rows and half * hw * itemsize >= _MIN_SPLIT_BYTES:
            rt = half
    else:
        # Prefer an even number of row tiles so the two v7x TCs stay balanced.
        ntiles = -(-rows // rt)
        if ntiles % 2 == 1 and ntiles > 1:
            rt_even = _round_up(-(-rows // (ntiles + 1)), min_rt)
            if (min_rt <= rt_even < rows
                    and rt_even * hw * itemsize >= _MIN_SPLIT_BYTES):
                rt = rt_even
    return rt


def _instance_norm_single_pass(x2, epsilon, vmem_limit, target_elems, min_rt):
    rows, hw = x2.shape
    rt = _pick_rows_tile(rows, hw, min_rt, target_elems, x2.dtype.itemsize)
    kernel = functools.partial(_instance_norm_kernel, epsilon=float(epsilon), hw=hw)
    return pl.pallas_call(
        kernel,
        out_shape=jax.ShapeDtypeStruct((rows, hw), x2.dtype),
        grid=(pl.cdiv(rows, rt),),
        in_specs=[pl.BlockSpec((rt, hw), lambda i: (i, 0))],
        out_specs=pl.BlockSpec((rt, hw), lambda i: (i, 0)),
        compiler_params=pltpu.CompilerParams(
            dimension_semantics=("parallel",),
            vmem_limit_bytes=vmem_limit,
        ),
    )(x2)


# --------------------------------------------------------------------------
# Fused two-pass fallback for planes too large for VMEM.
# Grid (row_tiles, 2 phases, col_tiles).  Phase 0: accumulate shifted sums in
# VMEM scratch and derive mean / 1/(std+eps) in-place; phase 1: normalize.
# x is read twice from HBM (unavoidable); stats never touch HBM.
# --------------------------------------------------------------------------
def _fused_two_pass_kernel(x_ref, o_ref, shift_ref, s1_ref, s2_ref, *,
                           epsilon, hw, col_tile, ncols, partial_last):
    p = pl.program_id(1)
    j = pl.program_id(2)
    is_stats = p == 0

    @pl.when(jnp.logical_and(is_stats, j == 0))
    def _init():
        # Shifted accumulation (subtract the row's first element) to avoid
        # E[x^2]-E[x]^2 catastrophic cancellation when |mean| >> std.
        shift_ref[...] = x_ref[:, 0:1].astype(jnp.float32)
        s1_ref[...] = jnp.zeros_like(s1_ref)
        s2_ref[...] = jnp.zeros_like(s2_ref)

    @pl.when(is_stats)
    def _accumulate():
        x = x_ref[...].astype(jnp.float32)                 # (rt, ct)
        xs = x - shift_ref[...]

        def _accum(v):
            s1_ref[...] += jnp.sum(v, axis=-1, keepdims=True)
            s2_ref[...] += jnp.sum(v * v, axis=-1, keepdims=True)

        if partial_last:
            # Mask only on the final partial column tile; full tiles skip the
            # iota/compare/select entirely.
            @pl.when(j < ncols - 1)
            def _():
                _accum(xs)

            @pl.when(j == ncols - 1)
            def _():
                col = (ncols - 1) * col_tile + jax.lax.broadcasted_iota(
                    jnp.int32, xs.shape, 1)
                _accum(jnp.where(col < hw, xs, 0.0))
        else:
            _accum(xs)

    @pl.when(jnp.logical_and(is_stats, j == ncols - 1))
    def _finalize():
        inv_hw = 1.0 / hw
        m1 = s1_ref[...] * inv_hw
        var = jnp.maximum(s2_ref[...] * inv_hw - m1 * m1, 0.0)
        s1_ref[...] = shift_ref[...] + m1                  # mean
        s2_ref[...] = 1.0 / (jnp.sqrt(var) + epsilon)      # 1/(std+eps)

    @pl.when(p == 1)
    def _normalize():
        x = x_ref[...].astype(jnp.float32)
        o_ref[...] = ((x - s1_ref[...]) * s2_ref[...]).astype(o_ref.dtype)


def _instance_norm_two_pass(x2, epsilon, vmem_limit, target_elems, min_rt,
                            col_tile=None):
    rows, hw = x2.shape
    rt = rows if rows <= min_rt else min_rt
    if col_tile is not None:
        # Enforce lane alignment for caller-provided tiles.
        ct = min(_round_up(int(col_tile), _LANE), _round_up(hw, _LANE))
    else:
        ct = max(_LANE, (target_elems // max(rt, 1)) // _LANE * _LANE)
    if ct >= hw:
        ct = hw
    ncols = pl.cdiv(hw, ct)
    partial_last = (hw % ct) != 0

    kernel = functools.partial(
        _fused_two_pass_kernel, epsilon=float(epsilon), hw=hw, col_tile=ct,
        ncols=ncols, partial_last=partial_last)

    return pl.pallas_call(
        kernel,
        out_shape=jax.ShapeDtypeStruct((rows, hw), x2.dtype),
        grid=(pl.cdiv(rows, rt), 2, ncols),
        in_specs=[pl.BlockSpec((rt, ct), lambda i, p, j: (i, j))],
        # Phase 0 pins the output index to (i, 0) (never written, never flushed
        # before phase 1 rewrites it); phase 1 streams the real output tiles.
        out_specs=pl.BlockSpec((rt, ct), lambda i, p, j: (i, j * p)),
        scratch_shapes=[pltpu.VMEM((rt, 1), jnp.float32),   # shift
                        pltpu.VMEM((rt, 1), jnp.float32),   # s1 -> mean
                        pltpu.VMEM((rt, 1), jnp.float32)],  # s2 -> 1/(std+eps)
        compiler_params=pltpu.CompilerParams(
            dimension_semantics=("parallel", "arbitrary", "arbitrary"),
            vmem_limit_bytes=vmem_limit,
        ),
    )(x2)


# --------------------------------------------------------------------------
# Public wrapper (matches PyTorch CustomInstanceNorm.forward semantics).
# --------------------------------------------------------------------------
def custom_instance_norm(x, epsilon=1e-5, *, force_two_pass=False, col_tile=None):
    N, C, H, W = x.shape
    rows, hw = N * C, H * W
    x2 = x.reshape(rows, hw)   # free for contiguous NCHW; lane-dense layout

    vmem_limit, target_elems, max_sp_elems = _hw_config()
    min_rt = _min_row_tile(x.dtype)

    use_two_pass = force_two_pass or (min(rows, min_rt) * hw > max_sp_elems)
    if use_two_pass:
        out2 = _instance_norm_two_pass(x2, epsilon, vmem_limit, target_elems,
                                       min_rt, col_tile)
    else:
        out2 = _instance_norm_single_pass(x2, epsilon, vmem_limit, target_elems,
                                          min_rt)
    return out2.reshape(N, C, H, W)


def _reference(x, epsilon=1e-5):
    xf = x.astype(jnp.float32)
    mean = jnp.mean(xf, axis=(2, 3), keepdims=True)
    std = jnp.sqrt(jnp.mean((xf - mean) ** 2, axis=(2, 3), keepdims=True))
    return (xf - mean) / (std + epsilon)


if __name__ == "__main__":
    key = jax.random.PRNGKey(0)
    x = jax.random.normal(key, (2, 4, 16, 16), dtype=jnp.float32)

    # Single-pass (default) path.
    out = jax.block_until_ready(custom_instance_norm(x))
    ref = _reference(x)
    assert out.shape == x.shape
    assert jnp.allclose(out, ref, atol=1e-5, rtol=1e-5)

    # Fused large-plane fallback, forced on the same small input.
    out_fb = jax.block_until_ready(
        custom_instance_norm(x, force_two_pass=True, col_tile=128))
    assert jnp.allclose(out_fb, ref, atol=1e-5, rtol=1e-5)

    # Non-128-divisible spatial size: exercises the partial-last-tile mask.
    x_odd = jax.random.normal(jax.random.PRNGKey(1), (1, 8, 12, 20),
                              dtype=jnp.float32)
    out_odd = jax.block_until_ready(
        custom_instance_norm(x_odd, force_two_pass=True, col_tile=128))
    assert jnp.allclose(out_odd, _reference(x_odd), atol=1e-5, rtol=1e-5)

    # Non-128-divisible H*W on the single-pass path (full-dim block exemption).
    x_sp = jax.random.normal(jax.random.PRNGKey(2), (2, 3, 10, 13),
                             dtype=jnp.float32)
    out_sp = jax.block_until_ready(custom_instance_norm(x_sp))
    assert jnp.allclose(out_sp, _reference(x_sp), atol=1e-5, rtol=1e-5)

    # bf16 input: exercises dtype-aware sublane packing; compute stays in f32.
    x_bf = jax.random.normal(jax.random.PRNGKey(3), (2, 4, 16, 16),
                             dtype=jnp.bfloat16)
    out_bf = jax.block_until_ready(custom_instance_norm(x_bf))
    assert jnp.allclose(out_bf.astype(jnp.float32), _reference(x_bf),
                        atol=3e-2, rtol=3e-2)

    print("KERNEL_OK")
</pallas_src>

<mosaic_0001>
module attributes {stable_mosaic.version = 11 : i64} {
  func.func @_instance_norm_kernel(%arg0: i32, %arg1: memref<8x256xf32, #tpu.memory_space<vmem>>, %arg2: memref<8x256xf32, #tpu.memory_space<vmem>>) attributes {dimension_semantics = [#tpu.dimension_semantics<parallel>], iteration_bounds = array<i64: 1>, scalar_prefetch = 0 : i64, scratch_operands = 0 : i64, tpu.core_type = #tpu.core_type<tc>, window_params = [{transform_indices = @transform_0, window_bounds = array<i64: 8, 256>}, {transform_indices = @transform_1, window_bounds = array<i64: 8, 256>}]} {
    %c0 = arith.constant 0 : index
    %c0_0 = arith.constant 0 : index
    %0 = vector.load %arg1[%c0, %c0_0] : memref<8x256xf32, #tpu.memory_space<vmem>>, vector<8x256xf32>
    %cst = arith.constant dense<0.000000e+00> : vector<8xf32>
    %1 = vector.multi_reduction <add>, %0, %cst [1] : vector<8x256xf32> to vector<8xf32>
    %2 = vector.shape_cast %1 : vector<8xf32> to vector<8x1xf32>
    %cst_1 = arith.constant 3.906250e-03 : f32
    %3 = vector.broadcast %cst_1 : f32 to vector<8x1xf32>
    %4 = arith.mulf %2, %3 : vector<8x1xf32>
    %5 = vector.broadcast %4 : vector<8x1xf32> to vector<8x256xf32>
    %6 = arith.subf %0, %5 : vector<8x256xf32>
    %7 = arith.mulf %6, %6 : vector<8x256xf32>
    %cst_2 = arith.constant dense<0.000000e+00> : vector<8xf32>
    %8 = vector.multi_reduction <add>, %7, %cst_2 [1] : vector<8x256xf32> to vector<8xf32>
    %9 = vector.shape_cast %8 : vector<8xf32> to vector<8x1xf32>
    %cst_3 = arith.constant 3.906250e-03 : f32
    %10 = vector.broadcast %cst_3 : f32 to vector<8x1xf32>
    %11 = arith.mulf %9, %10 : vector<8x1xf32>
    %12 = math.sqrt %11 : vector<8x1xf32>
    %cst_4 = arith.constant 9.99999974E-6 : f32
    %13 = vector.broadcast %cst_4 : f32 to vector<8x1xf32>
    %14 = arith.addf %12, %13 : vector<8x1xf32>
    %cst_5 = arith.constant 1.000000e+00 : f32
    %15 = vector.broadcast %cst_5 : f32 to vector<8x1xf32>
    %16 = arith.divf %15, %14 : vector<8x1xf32>
    %17 = vector.broadcast %16 : vector<8x1xf32> to vector<8x256xf32>
    %18 = arith.mulf %6, %17 : vector<8x256xf32>
    %c0_6 = arith.constant 0 : index
    %c0_7 = arith.constant 0 : index
    %19 = vector.load %arg2[%c0_6, %c0_7] : memref<8x256xf32, #tpu.memory_space<vmem>>, vector<8x256xf32>
    tpu.vector_store %arg2[%c0_6, %c0_7], %18 {strides = array<i32>} : memref<8x256xf32, #tpu.memory_space<vmem>>, vector<8x256xf32>,
    return
  }
  func.func @transform_0(%arg0: i32) -> (i32, i32) {
    %c0_i32 = arith.constant 0 : i32
    %c0_i32_0 = arith.constant 0 : i32
    return %arg0, %c0_i32 : i32, i32
  }
  func.func @transform_1(%arg0: i32) -> (i32, i32) {
    %c0_i32 = arith.constant 0 : i32
    %c0_i32_0 = arith.constant 0 : i32
    return %arg0, %c0_i32 : i32, i32
  }
}

</mosaic_0001>

<llo_original>
// kernel: tpu_custom_call.1
$region0: #{tpu_custom_call.1}
  #allocation0 [shape = 'u32[]', space=smem, size = 0x4, offset = 0x4, fixed_abs, tag = 'smem constant byte address 0x4 - core index']
  #allocation1 [shape = 'u32[72,128]{1,0:T(1,128)}', space=vmem, size = 0x9000, scoped, tag = 'internal scratch']
  %s0 = inlined_call_operand.hbm [shape: f32[8,256], index: 0, kind: input, shape index: {}]
  %s1 = inlined_call_operand.hbm [shape: f32[8,256], index: 1, kind: output, shape index: {}]
  %s2 = sld [smem:[#allocation0]]
  $region18: #{tpu_custom_call.1} parent=0
    _
  %s4 = ssub.s32 1, %s2
  %s5 = scalar_select 0, %s4, %s2
  $region1: #{tpu_custom_call.1} parent=0
    #allocation2 [shape = 'u8[8192]{0}', space=vmem, size = 0x2000, scoped, tag = 'input window, operand 0, single buffered']
    #allocation3 [shape = 's32[1]{0}', space=sflag, size = 0x4, scoped, tag = 'scoped memory for tpu_custom_call.1']
    #allocation4 [shape = 's32[1]{0}', space=sflag, size = 0x4, scoped, tag = 'scoped memory for tpu_custom_call.1']
    #allocation5 [shape = 'u8[8192]{0}', space=vmem, size = 0x2000, scoped, tag = 'output window, operand 0, single buffered']
    %6 = vsyncpa [#allocation3], 0
    %7 = vsyncpa [#allocation4], 0
    // Predicated region
    $region2: #{tpu_custom_call.1} parent=1 // pred_check
      _
    $region3: #{tpu_custom_call.1} parent=1 // pred_check_branch
      %9 = sbr.rel (0) target = $region5
    $region4: #{tpu_custom_call.1} parent=1 // pred_region
      %11 = vsyncadd [#allocation3], 0
      %s13 = sshll.u32 %s0, 4
      %s14 = int_to_ptr.hbm [resolvable:$true] %s13
      %s15 = sshll.u32 [#allocation2], 4
      %s16 = int_to_ptr.vmem [resolvable:$true] %s15
      %18 = dma.hbm_to_vmem [thread:$0]  %s14, 256, %s16, [#allocation3]
    $region5: #{tpu_custom_call.1} parent=1 // pred_fallthru
      _
    // Predicated region
    $region6: #{tpu_custom_call.1} parent=1 // pred_check
      _
    $region7: #{tpu_custom_call.1} parent=1 // pred_check_branch
      %20 = sbr.rel (0) target = $region9
    $region8: #{tpu_custom_call.1} parent=1 // pred_region
      %22 = dma.done [#allocation3], 256
    $region9: #{tpu_custom_call.1} parent=1 // pred_fallthru
      _
    %v23 = vld [vmem:[#allocation2] sm:$0xff]
    %v24 = vld [vmem:[#allocation2 + $0x8] sm:$0xff]
    %v25 = vadd.f32 %v23, %v24
    %26 = vadd.xlane.f32.xlu0 %v25
    %v27 = vpop.xlane.xlu0 %26
    %v28 = vmul.f32 %v27, 0.00390625
    %v29 = vsub.f32 %v23, %v28
    %v30 = vsub.f32 %v24, %v28
    %v31 = vmul.f32 %v29, %v29
    %v32 = vmul.f32 %v30, %v30
    %v33 = vadd.f32 %v31, %v32
    %34 = vadd.xlane.f32.xlu0 %v33
    %v35 = vpop.xlane.xlu0 %34
    %v36 = vmul.f32 %v35, 0.00390625
    %v37 = vrsqrt.pop %v36
    %v38 = vmul.f32 %v37, %v36
    %v39 = vmul.f32 %v38, %v37
    %v40 = vmul.f32 0.5, %v39
    %v41 = vsub.f32 1.5, %v40
    %v42 = vmul.f32 %v37, %v41
    %v43 = vmul.f32 %v36, %v42
    %vm44 = vcmp.eq.f32.partialorder %v36, inf
    %v45 = vsel %vm44, %v36, %v43
    %vm46 = vcmp.eq.f32.partialorder %v36, 0.0
    %v47 = vand.u32 %v36, 2147483648
    %v48 = vsel %vm46, %v47, %v45
    %v49 = vadd.f32 %v48, 1e-05
    %v50 = vrcp.pop %v49
    %v51 = vmul.f32 %v49, %v50
    %v52 = vsub.f32 1.0, %v51
    %v53 = vmul.f32 %v50, %v52
    %v54 = vadd.f32 %v50, %v53
    %vm55 = vweird.f32 %v49
    %vm56 = vweird.f32 %v50
    %vm57 = vmor %vm55, %vm56
    %v58 = vsel %vm57, %v50, %v54
    %v59 = vand.u32 2147483647, %v49
    %vm60 = vcmp.eq.f32.partialorder %v59, 8.507059e+37
    %v61 = vand.u32 %v49, 2147483648
    %v62 = vor.u32 1.1754944e-38, %v61
    %v63 = vsel %vm60, %v62, %v58
    %v64 = vmul.f32 1.0, %v63
    %v65 = vmul.f32 %v29, %v64
    %v66 = vmul.f32 %v30, %v64
    %67 = vst [vmem:[#allocation5] sm:$0xff] %v65
    %68 = vst [vmem:[#allocation5 + $0x8] sm:$0xff] %v66
    // Predicated region
    $region10: #{tpu_custom_call.1} parent=1 // pred_check
      _
    $region11: #{tpu_custom_call.1} parent=1 // pred_check_branch
      %70 = sbr.rel (0) target = $region13
    $region12: #{tpu_custom_call.1} parent=1 // pred_region
      %72 = vsyncadd [#allocation4], 0
      %s74 = sshll.u32 [#allocation5], 4
      %s75 = int_to_ptr.vmem [resolvable:$true] %s74
      %s76 = sshll.u32 %s1, 4
      %s77 = int_to_ptr.hbm [resolvable:$true] %s76
      %79 = dma.vmem_to_hbm [thread:$0]  %s75, 256, %s77, [#allocation4]
    $region13: #{tpu_custom_call.1} parent=1 // pred_fallthru
      _
    // Predicated region
    $region14: #{tpu_custom_call.1} parent=1 // pred_check
      _
    $region15: #{tpu_custom_call.1} parent=1 // pred_check_branch
      %81 = sbr.rel (0) target = $region17
    $region16: #{tpu_custom_call.1} parent=1 // pred_region
      %83 = dma.done [#allocation4], 256
    $region17: #{tpu_custom_call.1} parent=1 // pred_fallthru
      _
    %84 = vsyncpa [#allocation3], 1
    %85 = vsyncpa [#allocation4], 1

</llo_original>
